<compile_context>
chip_gen: v6e
topology: v6e:2x2x1
jax: 0.10.0
libtpu: 0.0.40
codegen_flags: <defaults>
</compile_context>

<pallas_src>
import jax
import jax.numpy as jnp
from jax.experimental import pallas as pl
from jax.experimental.pallas import tpu as pltpu


def _round_up(x, m):
    return (x + m - 1) // m * m


def _cdiv(a, b):
    return (a + b - 1) // b


def _tensorcores_per_device():
    """Best-effort TensorCores behind one JAX device (2 on v7x, else 1)."""
    try:
        kind = jax.devices()[0].device_kind.lower()
        if "v7" in kind:
            return 2
    except Exception:
        pass
    return 1


def _row_tile_cap(Hp):
    """Vreg-pressure cap for layer-1 FMAs (acc is (TB, Hp) f32 in vregs)."""
    cap = 256 if Hp <= 128 else 128
    try:
        if "v5" in jax.devices()[0].device_kind.lower():
            cap = min(cap, 128)   # v5e: 4x128 MXU, single vst slot
    except Exception:
        pass
    return cap


def leaf_encoder_kernel(x_ref, w1_ref, b1_ref, w2_ref, b2_ref, o_ref, h_ref):
    # Blocks: x (TB, 4), w1 (4, Hp), b1 (1, Hp), w2 (Hp, TN), b2 (1, TN),
    #         o (TB, TN); scratch h (TB, Hp) f32.
    @pl.when(pl.program_id(1) == 0)
    def _():
        # Layer 1: K=4 contraction as VPU broadcast-FMAs (outer products);
        # the MXU would be >99% idle at K=4.  Cached in VMEM scratch so it is
        # computed once per batch tile, not once per feature tile.
        x = x_ref[...]
        w1 = w1_ref[...]
        acc = b1_ref[...]                       # (1, Hp), broadcasts over rows
        acc = acc + x[:, 0:1] * w1[0:1, :]
        acc = acc + x[:, 1:2] * w1[1:2, :]
        acc = acc + x[:, 2:3] * w1[2:3, :]
        acc = acc + x[:, 3:4] * w1[3:4, :]
        h_ref[...] = jnp.tanh(acc)

    # Layer 2: real contraction over Hp -> MXU, f32 accumulation.
    w2 = w2_ref[...]
    h = h_ref[...].astype(w2.dtype)
    y = jnp.dot(h, w2, preferred_element_type=jnp.float32) + b2_ref[...]
    o_ref[...] = jnp.tanh(y).astype(o_ref.dtype)


def make_leaf_encoder(w1, b1, w2, b2, *, block_rows=None, batch_splits=None,
                      matmul_dtype=jnp.float32):
    """Pads parameters ONCE and returns a jitted encode(x: (B, 4)) -> (B, F).

    w1: (4, H), b1: (1, H) or (H,), w2: (H, F), b2: (1, F) or (F,).
    """
    K, H = w1.shape
    assert K == 4, "leaf encoder expects 4 radius values per leaf"
    F = w2.shape[1]
    Hp = _round_up(H, 128)
    Fp = _round_up(F, 128)

    # Zero padding is exact: padded hidden units are tanh(0)=0 with zeroed w2
    # rows; padded output columns are sliced off; padded batch rows discarded.
    w1p = jnp.zeros((4, Hp), jnp.float32).at[:, :H].set(
        jnp.asarray(w1, jnp.float32))
    b1p = jnp.zeros((1, Hp), jnp.float32).at[:, :H].set(
        jnp.reshape(jnp.asarray(b1, jnp.float32), (1, H)))
    w2p = jnp.zeros((Hp, Fp), matmul_dtype).at[:H, :F].set(
        jnp.asarray(w2, matmul_dtype))
    b2p = jnp.zeros((1, Fp), jnp.float32).at[:, :F].set(
        jnp.reshape(jnp.asarray(b2, jnp.float32), (1, F)))

    splits = batch_splits if batch_splits is not None else _tensorcores_per_device()
    row_cap = _row_tile_cap(Hp)
    item = jnp.dtype(matmul_dtype).itemsize

    def _encode(x, w1p, b1p, w2p, b2p):
        B = x.shape[0]

        # Batch tiling: few fat tiles (one per TensorCore when possible);
        # each grid step costs ~0.35 us fixed overhead.
        if block_rows is not None:
            TB = _round_up(int(block_rows), 8)
        else:
            TB = min(_round_up(_cdiv(_round_up(B, 8), splits), 8), row_cap)
        nb = _cdiv(B, TB)
        Bp = nb * TB

        # Feature tiling: keep the double-buffered (Hp, TN) w2 block plus the
        # (TB, TN) out tile within a conservative VMEM budget (v7x: 64 MiB
        # physical / 32 MiB default scoped).
        budget = 20 << 20
        TN = 128
        for cand in range(Fp, 0, -128):
            if Fp % cand:
                continue
            need = (2 * Hp * cand * item          # w2 (double-buffered)
                    + 2 * (TB + 1) * cand * 4     # out tile + b2
                    + TB * Hp * 4                 # h scratch
                    + 2 * (5 * Hp + TB * 4) * 4)  # w1, b1, x
            if need <= budget:
                TN = cand
                break
        nf = Fp // TN

        need = (2 * Hp * TN * item + 2 * (TB + 1) * TN * 4 + TB * Hp * 4
                + 2 * (5 * Hp + TB * 4) * 4)
        vmem_limit = int(min(max(2 * need + (4 << 20), 32 << 20), 60 << 20))

        xp = jnp.zeros((Bp, 4), jnp.float32).at[:B, :].set(
            x.astype(jnp.float32))

        out_padded = pl.pallas_call(
            leaf_encoder_kernel,
            out_shape=jax.ShapeDtypeStruct((Bp, Fp), jnp.float32),
            grid=(nb, nf),
            in_specs=[
                pl.BlockSpec((TB, 4), lambda i, j: (i, 0)),   # batch of leaves
                pl.BlockSpec((4, Hp), lambda i, j: (0, 0)),   # weights resident
                pl.BlockSpec((1, Hp), lambda i, j: (0, 0)),
                pl.BlockSpec((Hp, TN), lambda i, j: (0, j)),  # feature tile of w2
                pl.BlockSpec((1, TN), lambda i, j: (0, j)),
            ],
            out_specs=pl.BlockSpec((TB, TN), lambda i, j: (i, j)),
            scratch_shapes=[pltpu.VMEM((TB, Hp), jnp.float32)],
            compiler_params=pltpu.CompilerParams(
                dimension_semantics=("parallel", "arbitrary"),
                vmem_limit_bytes=vmem_limit,
            ),
        )(xp, w1p, b1p, w2p, b2p)

        # Padded lanes/rows are zero; the slice fuses under jit.
        return out_padded[:B, :F]

    encode_jit = jax.jit(_encode)

    def encode(x):
        return encode_jit(x, w1p, b1p, w2p, b2p)

    return encode


def leaf_encoder_batched(x, w1, b1, w2, b2, **kwargs):
    """One-off convenience: x (B, 4) -> (B, F)."""
    return make_leaf_encoder(w1, b1, w2, b2, **kwargs)(x)


def leaf_encoder(radius, w1, b1, w2, b2, **kwargs):
    """Single-leaf path matching the original forward: radius (4,) -> (1, F)."""
    rad = jnp.reshape(jnp.asarray(radius, jnp.float32), (1, 4))
    return leaf_encoder_batched(rad, w1, b1, w2, b2, **kwargs)


def init_params(key, hidden_size, feature_size):
    """Deterministic synthetic params in (in, out) layout (== nn.Linear weight.T)."""
    k1, k2, k3, k4 = jax.random.split(key, 4)
    w1 = jax.random.uniform(k1, (4, hidden_size), jnp.float32, -0.5, 0.5)
    b1 = jax.random.uniform(k2, (1, hidden_size), jnp.float32, -0.5, 0.5)
    w2 = jax.random.uniform(k3, (hidden_size, feature_size), jnp.float32, -0.5, 0.5)
    b2 = jax.random.uniform(k4, (1, feature_size), jnp.float32, -0.5, 0.5)
    return w1, b1, w2, b2


if __name__ == "__main__":
    hidden_size = 32
    feature_size = 16
    num_leaves = 16   # batch of leaves encoded in one pallas_call

    key = jax.random.PRNGKey(0)
    k_in, k_par = jax.random.split(key)

    # Each leaf contributes 4 radius scalars (input.radius -> (1, 4) per leaf).
    radii = jax.random.normal(k_in, (num_leaves, 4), jnp.float32)
    w1, b1, w2, b2 = init_params(k_par, hidden_size, feature_size)

    # Build once (params padded once, call path jitted), then call.
    encode = make_leaf_encoder(w1, b1, w2, b2)
    out = jax.block_until_ready(encode(radii))

    # Pure-JAX reference of the same math.
    ref = jnp.tanh(jnp.tanh(radii @ w1 + b1) @ w2 + b2)
    assert out.shape == (num_leaves, feature_size)
    assert jnp.allclose(out, ref, atol=1e-5, rtol=1e-5), "batched mismatch vs reference"

    # Single-leaf path (original module semantics).
    out1 = jax.block_until_ready(encode(jnp.reshape(radii[0], (1, 4))))
    assert out1.shape == (1, feature_size)
    assert jnp.allclose(out1, ref[0:1], atol=1e-5, rtol=1e-5), "single-leaf mismatch"

    print("KERNEL_OK")
</pallas_src>

<mosaic_0001>
module attributes {stable_mosaic.version = 11 : i64} {
  func.func @leaf_encoder_kernel(%arg0: i32, %arg1: i32, %arg2: memref<16x4xf32, #tpu.memory_space<vmem>>, %arg3: memref<4x128xf32, #tpu.memory_space<vmem>>, %arg4: memref<1x128xf32, #tpu.memory_space<vmem>>, %arg5: memref<128x128xf32, #tpu.memory_space<vmem>>, %arg6: memref<1x128xf32, #tpu.memory_space<vmem>>, %arg7: memref<16x128xf32, #tpu.memory_space<vmem>>, %arg8: memref<16x128xf32, #tpu.memory_space<vmem>>) attributes {dimension_semantics = [#tpu.dimension_semantics<parallel>, #tpu.dimension_semantics<arbitrary>], iteration_bounds = array<i64: 1, 1>, scalar_prefetch = 0 : i64, scratch_operands = 1 : i64, tpu.core_type = #tpu.core_type<tc>, window_params = [{transform_indices = @transform_0, window_bounds = array<i64: 16, 4>}, {pipeline_mode = #tpu.pipeline_mode<synchronous>, transform_indices = @transform_1, window_bounds = array<i64: 4, 128>}, {pipeline_mode = #tpu.pipeline_mode<synchronous>, transform_indices = @transform_2, window_bounds = array<i64: 1, 128>}, {transform_indices = @transform_3, window_bounds = array<i64: 128, 128>}, {transform_indices = @transform_4, window_bounds = array<i64: 1, 128>}, {transform_indices = @transform_5, window_bounds = array<i64: 16, 128>}]} {
    %c0_i32 = arith.constant 0 : i32
    %0 = arith.cmpi eq, %arg1, %c0_i32 : i32
    %1 = arith.extui %0 : i1 to i32
    %c0_i32_0 = arith.constant 0 : i32
    %2 = arith.cmpi ne, %1, %c0_i32_0 : i32
    scf.if %2 {
      %c0_8 = arith.constant 0 : index
      %c0_9 = arith.constant 0 : index
      %11 = vector.load %arg2[%c0_8, %c0_9] : memref<16x4xf32, #tpu.memory_space<vmem>>, vector<16x4xf32>
      %c0_10 = arith.constant 0 : index
      %c0_11 = arith.constant 0 : index
      %12 = vector.load %arg3[%c0_10, %c0_11] : memref<4x128xf32, #tpu.memory_space<vmem>>, vector<4x128xf32>
      %c0_12 = arith.constant 0 : index
      %c0_13 = arith.constant 0 : index
      %13 = vector.load %arg4[%c0_12, %c0_13] : memref<1x128xf32, #tpu.memory_space<vmem>>, vector<1x128xf32>
      %14 = vector.extract_strided_slice %11 {offsets = [0, 0], sizes = [16, 1], strides = [1, 1]} : vector<16x4xf32> to vector<16x1xf32>
      %15 = vector.extract_strided_slice %12 {offsets = [0, 0], sizes = [1, 128], strides = [1, 1]} : vector<4x128xf32> to vector<1x128xf32>
      %16 = vector.broadcast %14 : vector<16x1xf32> to vector<16x128xf32>
      %17 = vector.broadcast %15 : vector<1x128xf32> to vector<16x128xf32>
      %18 = arith.mulf %16, %17 : vector<16x128xf32>
      %19 = vector.broadcast %13 : vector<1x128xf32> to vector<16x128xf32>
      %20 = arith.addf %19, %18 : vector<16x128xf32>
      %21 = vector.extract_strided_slice %11 {offsets = [0, 1], sizes = [16, 1], strides = [1, 1]} : vector<16x4xf32> to vector<16x1xf32>
      %22 = vector.extract_strided_slice %12 {offsets = [1, 0], sizes = [1, 128], strides = [1, 1]} : vector<4x128xf32> to vector<1x128xf32>
      %23 = vector.broadcast %21 : vector<16x1xf32> to vector<16x128xf32>
      %24 = vector.broadcast %22 : vector<1x128xf32> to vector<16x128xf32>
      %25 = arith.mulf %23, %24 : vector<16x128xf32>
      %26 = arith.addf %20, %25 : vector<16x128xf32>
      %27 = vector.extract_strided_slice %11 {offsets = [0, 2], sizes = [16, 1], strides = [1, 1]} : vector<16x4xf32> to vector<16x1xf32>
      %28 = vector.extract_strided_slice %12 {offsets = [2, 0], sizes = [1, 128], strides = [1, 1]} : vector<4x128xf32> to vector<1x128xf32>
      %29 = vector.broadcast %27 : vector<16x1xf32> to vector<16x128xf32>
      %30 = vector.broadcast %28 : vector<1x128xf32> to vector<16x128xf32>
      %31 = arith.mulf %29, %30 : vector<16x128xf32>
      %32 = arith.addf %26, %31 : vector<16x128xf32>
      %33 = vector.extract_strided_slice %11 {offsets = [0, 3], sizes = [16, 1], strides = [1, 1]} : vector<16x4xf32> to vector<16x1xf32>
      %34 = vector.extract_strided_slice %12 {offsets = [3, 0], sizes = [1, 128], strides = [1, 1]} : vector<4x128xf32> to vector<1x128xf32>
      %35 = vector.broadcast %33 : vector<16x1xf32> to vector<16x128xf32>
      %36 = vector.broadcast %34 : vector<1x128xf32> to vector<16x128xf32>
      %37 = arith.mulf %35, %36 : vector<16x128xf32>
      %38 = arith.addf %32, %37 : vector<16x128xf32>
      %39 = math.tanh %38 : vector<16x128xf32>
      %c0_14 = arith.constant 0 : index
      %c0_15 = arith.constant 0 : index
      %40 = vector.load %arg8[%c0_14, %c0_15] : memref<16x128xf32, #tpu.memory_space<vmem>>, vector<16x128xf32>
      tpu.vector_store %arg8[%c0_14, %c0_15], %39 {strides = array<i32>} : memref<16x128xf32, #tpu.memory_space<vmem>>, vector<16x128xf32>,
    } else {
    }
    %c0 = arith.constant 0 : index
    %c0_1 = arith.constant 0 : index
    %3 = vector.load %arg5[%c0, %c0_1] : memref<128x128xf32, #tpu.memory_space<vmem>>, vector<128x128xf32>
    %c0_2 = arith.constant 0 : index
    %c0_3 = arith.constant 0 : index
    %4 = vector.load %arg8[%c0_2, %c0_3] : memref<16x128xf32, #tpu.memory_space<vmem>>, vector<16x128xf32>
    %cst = arith.constant dense<0.000000e+00> : vector<16x128xf32>
    %5 = tpu.matmul %4, %3, %cst {dimension_numbers = #tpu.dot_dimension_numbers<[1], [0], [0], [1], [0, 0, 1, 1], [], []>} : vector<16x128xf32>, vector<128x128xf32>, vector<16x128xf32> -> vector<16x128xf32>
    %c0_4 = arith.constant 0 : index
    %c0_5 = arith.constant 0 : index
    %6 = vector.load %arg6[%c0_4, %c0_5] : memref<1x128xf32, #tpu.memory_space<vmem>>, vector<1x128xf32>
    %7 = vector.broadcast %6 : vector<1x128xf32> to vector<16x128xf32>
    %8 = arith.addf %5, %7 : vector<16x128xf32>
    %9 = math.tanh %8 : vector<16x128xf32>
    %c0_6 = arith.constant 0 : index
    %c0_7 = arith.constant 0 : index
    %10 = vector.load %arg7[%c0_6, %c0_7] : memref<16x128xf32, #tpu.memory_space<vmem>>, vector<16x128xf32>
    tpu.vector_store %arg7[%c0_6, %c0_7], %9 {strides = array<i32>} : memref<16x128xf32, #tpu.memory_space<vmem>>, vector<16x128xf32>,
    return
  }
  func.func @transform_0(%arg0: i32, %arg1: i32) -> (i32, i32) {
    %c0_i32 = arith.constant 0 : i32
    %c0_i32_0 = arith.constant 0 : i32
    return %arg0, %c0_i32 : i32, i32
  }
  func.func @transform_1(%arg0: i32, %arg1: i32) -> (i32, i32) {
    %c0_i32 = arith.constant 0 : i32
    %c0_i32_0 = arith.constant 0 : i32
    %c0_i32_1 = arith.constant 0 : i32
    return %c0_i32, %c0_i32_0 : i32, i32
  }
  func.func @transform_2(%arg0: i32, %arg1: i32) -> (i32, i32) {
    %c0_i32 = arith.constant 0 : i32
    %c0_i32_0 = arith.constant 0 : i32
    %c0_i32_1 = arith.constant 0 : i32
    return %c0_i32, %c0_i32_0 : i32, i32
  }
  func.func @transform_3(%arg0: i32, %arg1: i32) -> (i32, i32) {
    %c0_i32 = arith.constant 0 : i32
    %c0_i32_0 = arith.constant 0 : i32
    return %c0_i32, %arg1 : i32, i32
  }
  func.func @transform_4(%arg0: i32, %arg1: i32) -> (i32, i32) {
    %c0_i32 = arith.constant 0 : i32
    %c0_i32_0 = arith.constant 0 : i32
    return %c0_i32, %arg1 : i32, i32
  }
  func.func @transform_5(%arg0: i32, %arg1: i32) -> (i32, i32) {
    %c0_i32 = arith.constant 0 : i32
    return %arg0, %arg1 : i32, i32
  }
}

</mosaic_0001>

<llo_original>
// kernel: _encode.1
$region0: #{_encode.1}
  #allocation0 [shape = 'u32[]', space=smem, size = 0x4, offset = 0x4, fixed_abs, tag = 'smem constant byte address 0x4 - core index']
  #allocation1 [shape = 'u32[144,128]{1,0:T(1,128)}', space=vmem, size = 0x12000, scoped, tag = 'internal scratch']
  #allocation2 [shape = 'f32[16,128]{1,0:T(8,128)}', space=vmem, size = 0x2000, scoped, tag = 'scratch operand']
  %s0 = inlined_call_operand.vmem [shape: f32[16,4], index: 0, kind: input, shape index: {}]
  %s1 = inlined_call_operand.vmem [shape: f32[4,128], index: 1, kind: input, shape index: {}]
  %s2 = inlined_call_operand.vmem [shape: f32[1,128], index: 2, kind: input, shape index: {}]
  %s3 = inlined_call_operand.hbm [shape: f32[128,128], index: 3, kind: input, shape index: {}]
  %s4 = inlined_call_operand.vmem [shape: f32[1,128], index: 4, kind: input, shape index: {}]
  %s5 = inlined_call_operand.hbm [shape: f32[16,128], index: 5, kind: output, shape index: {}]
  %s6 = sld [smem:[#allocation0]]
  $region38: #{_encode.1} parent=0
    _
  %s8 = ssub.s32 1, %s6
  %s9 = scalar_select 0, %s8, %s6
  $region1: #{_encode.1} parent=0
    #allocation3 [shape = 'u8[65536]{0}', space=vmem, size = 0x10000, scoped, tag = 'input window, operand 3, single buffered']
    #allocation4 [shape = 's32[1]{0}', space=sflag, size = 0x4, scoped, tag = 'scoped memory for _encode.1']
    #allocation5 [shape = 's32[1]{0}', space=sflag, size = 0x4, scoped, tag = 'scoped memory for _encode.1']
    #allocation6 [shape = 'u8[8192]{0}', space=vmem, size = 0x2000, scoped, tag = 'output window, operand 0, single buffered']
    %10 = vsyncpa [#allocation4], 0
    %11 = vsyncpa [#allocation5], 0
    // Predicated region
    $region2: #{_encode.1} parent=1 // pred_check
      _
    $region3: #{_encode.1} parent=1 // pred_check_branch
      %13 = sbr.rel (0) target = $region5
    $region4: #{_encode.1} parent=1 // pred_region
      _
    $region5: #{_encode.1} parent=1 // pred_fallthru
      _
    // Predicated region
    $region6: #{_encode.1} parent=1 // pred_check
      _
    $region7: #{_encode.1} parent=1 // pred_check_branch
      %15 = sbr.rel (0) target = $region9
    $region8: #{_encode.1} parent=1 // pred_region
      _
    $region9: #{_encode.1} parent=1 // pred_fallthru
      _
    // Predicated region
    $region10: #{_encode.1} parent=1 // pred_check
      _
    $region11: #{_encode.1} parent=1 // pred_check_branch
      %17 = sbr.rel (0) target = $region13
    $region12: #{_encode.1} parent=1 // pred_region
      _
    $region13: #{_encode.1} parent=1 // pred_fallthru
      _
    // Predicated region
    $region14: #{_encode.1} parent=1 // pred_check
      _
    $region15: #{_encode.1} parent=1 // pred_check_branch
      %19 = sbr.rel (0) target = $region17
    $region16: #{_encode.1} parent=1 // pred_region
      %s21 = ssub.s32 2048, 2048
      %22 = vsyncadd [#allocation4], %s21
      %s23 = sshll.u32 [#allocation3], 4
      %s24 = int_to_ptr.vmem [resolvable:$true] %s23
      %29 = dma.hbm_to_vmem [thread:$0]  %s3, 2048, %s24, [#allocation4], 128, 128, 8
    $region17: #{_encode.1} parent=1 // pred_fallthru
      _
    // Predicated region
    $region18: #{_encode.1} parent=1 // pred_check
      _
    $region19: #{_encode.1} parent=1 // pred_check_branch
      %31 = sbr.rel (0) target = $region21
    $region20: #{_encode.1} parent=1 // pred_region
      _
    $region21: #{_encode.1} parent=1 // pred_fallthru
      _
    // Predicated region
    $region22: #{_encode.1} parent=1 // pred_check
      _
    $region23: #{_encode.1} parent=1 // pred_check_branch
      %33 = sbr.rel (0) target = $region25
    $region24: #{_encode.1} parent=1 // pred_region
      %34 = dma.done [#allocation4], 2048
    $region25: #{_encode.1} parent=1 // pred_fallthru
      _
    %p35 = scmp.eq.s32.totalorder 0, 0
    // Predicated region
    $region26: #{_encode.1} parent=1 // pred_check
      %p36 = pneg %p35
    $region27: #{_encode.1} parent=1 // pred_check_branch
      %38 = sbr.rel (%p36) target = $region29
    $region28: #{_encode.1} parent=1 // pred_region
      %v39 = vld [vmem:[%s0] sm:$0xff]
      %v40 = vld [vmem:[%s0 + $0x8] sm:$0xff]
      %v41 = vld [vmem:[%s1] sm:$0xf]
      %v42 = vld [vmem:[%s2] sm:$0x1]
      %44 = vset.pattern.permute.xlu0 0
      %45 = vperm.xlu0 %44, %v39
      %v46 = vpop.permute.xlu0 %45
      %49 = vset.pattern.permute.xlu0 0
      %50 = vperm.xlu0 %49, %v40
      %v51 = vpop.permute.xlu0 %50
      %v53 = vlaneseq
      %v54 = vshrl.u32 %v53, 7
      %v55 = vsub.s32 0, %v54
      %v56 = vrot.slane %v41, %v55
      %v57 = vmul.f32 %v46, %v56
      %v58 = vmul.f32 %v51, %v56
      %v60 = vlaneseq
      %v61 = vshrl.u32 %v60, 7
      %v62 = vsub.s32 0, %v61
      %v63 = vrot.slane %v42, %v62
      %v65 = vadd.f32 %v63, %v57
      %v66 = vadd.f32 %v63, %v58
      %67 = vset.pattern.permute.xlu0 1
      %68 = vperm.xlu0 %67, %v39
      %v69 = vpop.permute.xlu0 %68
      %71 = vset.pattern.permute.xlu0 1
      %72 = vperm.xlu0 %71, %v40
      %v73 = vpop.permute.xlu0 %72
      %v75 = vlaneseq
      %v76 = vshrl.u32 %v75, 7
      %v77 = vsub.s32 1, %v76
      %v78 = vrot.slane %v41, %v77
      %v79 = vmul.f32 %v69, %v78
      %v80 = vmul.f32 %v73, %v78
      %v81 = vadd.f32 %v65, %v79
      %v82 = vadd.f32 %v66, %v80
      %83 = vset.pattern.permute.xlu0 2
      %84 = vperm.xlu0 %83, %v39
      %v85 = vpop.permute.xlu0 %84
      %87 = vset.pattern.permute.xlu0 2
      %88 = vperm.xlu0 %87, %v40
      %v89 = vpop.permute.xlu0 %88
      %v91 = vlaneseq
      %v92 = vshrl.u32 %v91, 7
      %v93 = vsub.s32 2, %v92
      %v94 = vrot.slane %v41, %v93
      %v95 = vmul.f32 %v85, %v94
      %v96 = vmul.f32 %v89, %v94
      %v97 = vadd.f32 %v81, %v95
      %v98 = vadd.f32 %v82, %v96
      %99 = vset.pattern.permute.xlu0 3
      %100 = vperm.xlu0 %99, %v39
      %v101 = vpop.permute.xlu0 %100
      %103 = vset.pattern.permute.xlu0 3
      %104 = vperm.xlu0 %103, %v40
      %v105 = vpop.permute.xlu0 %104
      %v107 = vlaneseq
      %v108 = vshrl.u32 %v107, 7
      %v109 = vsub.s32 3, %v108
      %v110 = vrot.slane %v41, %v109
      %v111 = vmul.f32 %v101, %v110
      %v112 = vmul.f32 %v105, %v110
      %v113 = vadd.f32 %v97, %v111
      %v114 = vadd.f32 %v98, %v112
      %v115 = vtanh.pop %v113
      %v116 = vtanh.pop %v114
      %117 = vst [vmem:[#allocation2] sm:$0xff] %v115
      %118 = vst [vmem:[#allocation2 + $0x8] sm:$0xff] %v116
    $region29: #{_encode.1} parent=1 // pred_fallthru
      _
    %v119 = vld [vmem:[#allocation3] sm:$0xff]
    %v120 = vld [vmem:[#allocation3 + $0x8] sm:$0xff]
    %v121 = vld [vmem:[#allocation3 + $0x10] sm:$0xff]
    %v122 = vld [vmem:[#allocation3 + $0x18] sm:$0xff]
    %v123 = vld [vmem:[#allocation3 + $0x20] sm:$0xff]
    %v124 = vld [vmem:[#allocation3 + $0x28] sm:$0xff]
    %v125 = vld [vmem:[#allocation3 + $0x30] sm:$0xff]
    %v126 = vld [vmem:[#allocation3 + $0x38] sm:$0xff]
    %v127 = vld [vmem:[#allocation3 + $0x40] sm:$0xff]
    %v128 = vld [vmem:[#allocation3 + $0x48] sm:$0xff]
    %v129 = vld [vmem:[#allocation3 + $0x50] sm:$0xff]
    %v130 = vld [vmem:[#allocation3 + $0x58] sm:$0xff]
    %v131 = vld [vmem:[#allocation3 + $0x60] sm:$0xff]
    %v132 = vld [vmem:[#allocation3 + $0x68] sm:$0xff]
    %v133 = vld [vmem:[#allocation3 + $0x70] sm:$0xff]
    %v134 = vld [vmem:[#allocation3 + $0x78] sm:$0xff]
    %v135 = vld [vmem:[#allocation2] sm:$0xff]
    %v136 = vld [vmem:[#allocation2 + $0x8] sm:$0xff]
    %v137 = vld [vmem:[%s4] sm:$0x1]
    %v139 = vlaneseq
    %v140 = vshrl.u32 %v139, 7
    %v141 = vsub.s32 0, %v140
    %v142 = vrot.slane %v137, %v141
    %144 = vmatprep.subr.mxu0 0.0
    %145 = vmatpush1.msra.mxu0 %v134
    %146 = vmatprep.subr.mxu0 0.0
    %147 = vmatpush1.msra.mxu0 %v133
    %148 = vmatprep.subr.mxu0 0.0
    %149 = vmatpush1.msra.mxu0 %v132
    %150 = vmatprep.subr.mxu0 0.0
    %151 = vmatpush1.msra.mxu0 %v131
    %152 = vmatprep.subr.mxu0 0.0
    %153 = vmatpush1.msra.mxu0 %v130
    %154 = vmatprep.subr.mxu0 0.0
    %155 = vmatpush1.msra.mxu0 %v129
    %156 = vmatprep.subr.mxu0 0.0
    %157 = vmatpush1.msra.mxu0 %v128
    %158 = vmatprep.subr.mxu0 0.0
    %159 = vmatpush1.msra.mxu0 %v127
    %160 = vmatprep.subr.mxu0 0.0
    %161 = vmatpush1.msra.mxu0 %v126
    %162 = vmatprep.subr.mxu0 0.0
    %163 = vmatpush1.msra.mxu0 %v125
    %164 = vmatprep.subr.mxu0 0.0
    %165 = vmatpush1.msra.mxu0 %v124
    %166 = vmatprep.subr.mxu0 0.0
    %167 = vmatpush1.msra.mxu0 %v123
    %168 = vmatprep.subr.mxu0 0.0
    %169 = vmatpush1.msra.mxu0 %v122
    %170 = vmatprep.subr.mxu0 0.0
    %171 = vmatpush1.msra.mxu0 %v121
    %172 = vmatprep.subr.mxu0 0.0
    %173 = vmatpush1.msra.mxu0 %v120
    %174 = vmatprep.subr.mxu0 0.0
    %175 = vmatpush1.msra.mxu0 %v119
    %176 = vmatprep.subr.mxu0 0.0
    %177 = vmatpush2.msra.mxu0 0.0
    %178 = vmatprep.subr.mxu0 0.0
    %179 = vmatpush2.msra.mxu0 0.0
    %180 = vmatprep.subr.mxu0 0.0
    %181 = vmatpush2.msra.mxu0 0.0
    %182 = vmatprep.subr.mxu0 0.0
    %183 = vmatpush2.msra.mxu0 0.0
    %184 = vmatprep.subr.mxu0 0.0
    %185 = vmatpush2.msra.mxu0 0.0
    %186 = vmatprep.subr.mxu0 0.0
    %187 = vmatpush2.msra.mxu0 0.0
    %188 = vmatprep.subr.mxu0 0.0
    %189 = vmatpush2.msra.mxu0 0.0
    %190 = vmatprep.subr.mxu0 0.0
    %191 = vmatpush2.msra.mxu0 0.0
    %192 = vmatprep.subr.mxu0 0.0
    %193 = vmatpush2.msra.mxu0 0.0
    %194 = vmatprep.subr.mxu0 0.0
    %195 = vmatpush2.msra.mxu0 0.0
    %196 = vmatprep.subr.mxu0 0.0
    %197 = vmatpush2.msra.mxu0 0.0
    %198 = vmatprep.subr.mxu0 0.0
    %199 = vmatpush2.msra.mxu0 0.0
    %200 = vmatprep.subr.mxu0 0.0
    %201 = vmatpush2.msra.mxu0 0.0
    %202 = vmatprep.subr.mxu0 0.0
    %203 = vmatpush2.msra.mxu0 0.0
    %204 = vmatprep.subr.mxu0 0.0
    %205 = vmatpush2.msra.mxu0 0.0
    %206 = vmatprep.subr.mxu0 0.0
    %207 = vmatpush2.msra.mxu0 0.0
    %208 = vmatprep.mubr.f32.mxu0 0.0
    %209 = vmatmul.mubr.f32.gmra.mxu0 %v135
    %v210 = vpop.f32.mrf.mxu0
    %v211 = vadd.f32 %v142, %v210
    %v212 = vpop.f32.mrf.mxu0
    %213 = vmatprep.mubr.f32.mxu0 0.0
    %214 = vmatmul.mubr.f32.gmra.mxu0 %v136
    %v215 = vpop.f32.mrf.mxu0
    %v216 = vadd.f32 %v142, %v215
    %v217 = vpop.f32.mrf.mxu0
    %218 = vdwg.mxu0
    %v219 = vtanh.pop %v211
    %v220 = vtanh.pop %v216
    %221 = vst [vmem:[#allocation6] sm:$0xff] %v219
    %222 = vst [vmem:[#allocation6 + $0x8] sm:$0xff] %v220
    // Predicated region
    $region30: #{_encode.1} parent=1 // pred_check
      _
    $region31: #{_encode.1} parent=1 // pred_check_branch
      %224 = sbr.rel (0) target = $region33
    $region32: #{_encode.1} parent=1 // pred_region
      %s226 = ssub.s32 256, 256
      %227 = vsyncadd [#allocation5], %s226
      %s228 = sshll.u32 [#allocation6], 4
      %s229 = int_to_ptr.vmem [resolvable:$true] %s228
      %234 = dma.vmem_to_hbm [thread:$0]  %s229, 256, %s5, [#allocation5], 128, 128, 8
    $region33: #{_encode.1} parent=1 // pred_fallthru
      _
    // Predicated region
    $region34: #{_encode.1} parent=1 // pred_check
      _
    $region35: #{_encode.1} parent=1 // pred_check_branch
      %236 = sbr.rel (0) target = $region37
    $region36: #{_encode.1} parent=1 // pred_region
      %237 = dma.done [#allocation5], 256
    $region37: #{_encode.1} parent=1 // pred_fallthru
      _
    %238 = vsyncpa [#allocation4], 1
    %239 = vsyncpa [#allocation5], 1

</llo_original>
